<compile_context>
chip_gen: v6e
topology: v6e:2x2x1
jax: 0.10.0
libtpu: 0.0.40
codegen_flags: <defaults>
</compile_context>

<pallas_src>
import functools
import math

import jax
import jax.numpy as jnp
from jax.experimental import pallas as pl
from jax.experimental.pallas import tpu as pltpu


# ----------------------------- tiling constants ----------------------------- #
_TM = 512        # row tile (>=512 keeps the weight stream under v6e's HBM roofline)
_TN = 1024       # output-column tile, 256-aligned (full MXU output on v6e/v7x)
_TK = 1536       # contraction tile: K=768 -> 1 step, K=3072 -> 2 steps
_TM_LN = 1024    # memory-bound LayerNorm row tile
_TQ = 256        # attention query tile


@functools.lru_cache(maxsize=None)
def _vmem_limit_bytes():
    """Generation-aware scoped-VMEM budget: ~3/4 of physical, capped at 96 MiB."""
    cap = 64 * 1024 * 1024                        # conservative default (v7x per-TC)
    try:
        cap = int(getattr(pltpu.get_tpu_info(), "vmem_capacity_bytes", cap))
    except Exception:
        pass
    return int(min(max(cap * 3 // 4, 32 * 1024 * 1024), 96 * 1024 * 1024))


def _pick_tile(dim, target, align):
    """Largest `align`-multiple tile <= target that divides dim (else full dim)."""
    if dim <= target:
        return dim
    t = (target // align) * align
    while t >= align:
        if dim % t == 0:
            return t
        t -= align
    return dim


# ----------------------------- Pallas kernels ------------------------------ #

def _bias_act(y, b_ref, activation):
    y = y + b_ref[...].astype(jnp.float32)
    if activation == "gelu":
        # TODO(synk): HF RoBERTa uses erf-based GELU; tanh approximation used here
        # for guaranteed Mosaic lowering (numerically very close).
        y = jax.nn.gelu(y, approximate=True)
    return y


def _matmul_direct_kernel(x_ref, w_ref, b_ref, o_ref, *, activation):
    # Single-K-step matmul: no accumulator scratch, no pl.when gates; the
    # epilogue is written straight from the MXU result (saves one (tm, tn) f32
    # VMEM buffer and an extra store pass -- matters most on v5e's single vst slot).
    y = jnp.dot(x_ref[...], w_ref[...], preferred_element_type=jnp.float32)
    o_ref[...] = _bias_act(y, b_ref, activation).astype(o_ref.dtype)


def _matmul_acc_kernel(x_ref, w_ref, b_ref, o_ref, acc_ref, *, activation):
    # Multi-K-step matmul with f32 accumulator and fused bias/activation epilogue.
    @pl.when(pl.program_id(2) == 0)
    def _():
        acc_ref[...] = jnp.zeros_like(acc_ref)

    acc_ref[...] += jnp.dot(x_ref[...], w_ref[...],
                            preferred_element_type=jnp.float32)

    @pl.when(pl.program_id(2) == pl.num_programs(2) - 1)
    def _():
        o_ref[...] = _bias_act(acc_ref[...], b_ref, activation).astype(o_ref.dtype)


def _res_ln(y, b_ref, r_ref, g_ref, bb_ref, eps):
    h = y + b_ref[...].astype(jnp.float32) + r_ref[...].astype(jnp.float32)
    mu = jnp.mean(h, axis=-1, keepdims=True)
    var = jnp.mean(jnp.square(h - mu), axis=-1, keepdims=True)
    return (h - mu) * jax.lax.rsqrt(var + eps) * g_ref[...] + bb_ref[...]


def _matmul_res_ln_direct_kernel(x_ref, w_ref, b_ref, r_ref, g_ref, bb_ref,
                                 o_ref, *, eps):
    y = jnp.dot(x_ref[...], w_ref[...], preferred_element_type=jnp.float32)
    o_ref[...] = _res_ln(y, b_ref, r_ref, g_ref, bb_ref, eps).astype(o_ref.dtype)


def _matmul_res_ln_acc_kernel(x_ref, w_ref, b_ref, r_ref, g_ref, bb_ref,
                              o_ref, acc_ref, *, eps):
    @pl.when(pl.program_id(1) == 0)
    def _():
        acc_ref[...] = jnp.zeros_like(acc_ref)

    acc_ref[...] += jnp.dot(x_ref[...], w_ref[...],
                            preferred_element_type=jnp.float32)

    @pl.when(pl.program_id(1) == pl.num_programs(1) - 1)
    def _():
        o_ref[...] = _res_ln(acc_ref[...], b_ref, r_ref, g_ref, bb_ref,
                             eps).astype(o_ref.dtype)


def _ln_kernel(x_ref, g_ref, b_ref, o_ref, *, eps):
    # Residual-free LayerNorm (embedding LN) -- math in f32, output bf16.
    h = x_ref[...].astype(jnp.float32)
    mu = jnp.mean(h, axis=-1, keepdims=True)
    var = jnp.mean(jnp.square(h - mu), axis=-1, keepdims=True)
    o_ref[...] = ((h - mu) * jax.lax.rsqrt(var + eps) * g_ref[...]
                  + b_ref[...]).astype(o_ref.dtype)


def _attn_kernel(q_ref, kv_ref, m_ref, o_ref, *, n_heads, head_dim, scale):
    # Query-tiled attention: one grid step per (batch, query tile).
    #   q_ref : (tq, 3H) bf16 -- query rows of the fused QKV (Q cols sliced here)
    #   kv_ref: (S, 3H)  bf16 -- full-sequence slab; its block index is constant
    #                            across query tiles so it is DMA'd once per batch
    #   m_ref : (1, S)   f32 additive mask
    #   o_ref : (tq, H)  bf16
    # Scores are bounded to (tq, S) f32 per head (never (S, S)).
    # TODO(synk): for very long sequences also tile K/V with an online softmax.
    H = n_heads * head_dim
    addmask = m_ref[...]
    # One XLU transpose of the whole K slab per step instead of one per head.
    kt = kv_ref[:, H:2 * H].T                               # (H, S) bf16
    pair = 2 if n_heads % 2 == 0 else 1                     # lane-aligned stores
    for h0 in range(0, n_heads, pair):
        ctx = []
        for h in range(h0, h0 + pair):
            lo = h * head_dim
            q = q_ref[:, lo:lo + head_dim] * scale          # fold scale into Q
            s = jnp.dot(q, kt[lo:lo + head_dim, :],
                        preferred_element_type=jnp.float32)  # (tq, S)
            s = s + addmask
            s = s - jnp.max(s, axis=-1, keepdims=True)
            p = jnp.exp(s)
            p = p * pl.reciprocal(jnp.sum(p, axis=-1, keepdims=True), approx=True)
            v = kv_ref[:, 2 * H + lo:2 * H + lo + head_dim]  # (S, Dh)
            ctx.append(jnp.dot(p.astype(v.dtype), v,
                               preferred_element_type=jnp.float32))
        out = ctx[0] if pair == 1 else jnp.concatenate(ctx, axis=-1)
        o_ref[:, h0 * head_dim:(h0 + pair) * head_dim] = out.astype(o_ref.dtype)


# ------------------------------ kernel wrappers ----------------------------- #

def linear(x, w, b, *, activation=None, out_dtype=jnp.bfloat16):
    M, K = x.shape
    Kw, N = w.shape
    assert K == Kw
    tm = _pick_tile(M, _TM, 16)
    tn = _pick_tile(N, _TN, 256)
    tk = _pick_tile(K, _TK, 128)
    vmem = _vmem_limit_bytes()
    b2 = b.reshape(1, N)
    if K // tk == 1:
        # Collapsed K grid (e.g. K = 768): direct-epilogue kernel, no scratch.
        return pl.pallas_call(
            functools.partial(_matmul_direct_kernel, activation=activation),
            out_shape=jax.ShapeDtypeStruct((M, N), out_dtype),
            grid_spec=pltpu.PrefetchScalarGridSpec(
                num_scalar_prefetch=0, grid=(M // tm, N // tn),
                in_specs=[
                    pl.BlockSpec((tm, K), lambda i, j: (i, 0)),
                    pl.BlockSpec((K, tn), lambda i, j: (0, j)),
                    pl.BlockSpec((1, tn), lambda i, j: (0, j)),
                ],
                out_specs=pl.BlockSpec((tm, tn), lambda i, j: (i, j))),
            compiler_params=pltpu.CompilerParams(
                dimension_semantics=("parallel", "parallel"),
                vmem_limit_bytes=vmem),
        )(x, w, b2)
    # TODO(synk): if a profile shows the weight DMA exposed with the larger K
    # tiles, add pipeline_mode=pl.Buffered(3) on the weight BlockSpec.
    return pl.pallas_call(
        functools.partial(_matmul_acc_kernel, activation=activation),
        out_shape=jax.ShapeDtypeStruct((M, N), out_dtype),
        grid_spec=pltpu.PrefetchScalarGridSpec(
            num_scalar_prefetch=0, grid=(M // tm, N // tn, K // tk),
            in_specs=[
                pl.BlockSpec((tm, tk), lambda i, j, k: (i, k)),
                pl.BlockSpec((tk, tn), lambda i, j, k: (k, j)),
                pl.BlockSpec((1, tn), lambda i, j, k: (0, j)),
            ],
            out_specs=pl.BlockSpec((tm, tn), lambda i, j, k: (i, j)),
            scratch_shapes=[pltpu.VMEM((tm, tn), jnp.float32)]),
        compiler_params=pltpu.CompilerParams(
            dimension_semantics=("parallel", "parallel", "arbitrary"),
            vmem_limit_bytes=vmem),
    )(x, w, b2)


def linear_residual_ln(x, w, b, residual, gamma, beta, *, eps,
                       out_dtype=jnp.bfloat16):
    # Matmul with residual-add + LayerNorm fused into the epilogue.
    # N is untiled so the LayerNorm reduction sees the full row.
    M, K = x.shape
    Kw, N = w.shape
    assert K == Kw and residual.shape == (M, N)
    tm = _pick_tile(M, _TM, 16)
    tk = _pick_tile(K, _TK, 128)
    vmem = _vmem_limit_bytes()
    args = (x, w, b.reshape(1, N), residual, gamma.reshape(1, N),
            beta.reshape(1, N))
    if K // tk == 1:
        return pl.pallas_call(
            functools.partial(_matmul_res_ln_direct_kernel, eps=eps),
            out_shape=jax.ShapeDtypeStruct((M, N), out_dtype),
            grid_spec=pltpu.PrefetchScalarGridSpec(
                num_scalar_prefetch=0, grid=(M // tm,),
                in_specs=[
                    pl.BlockSpec((tm, K), lambda i: (i, 0)),
                    pl.BlockSpec((K, N), lambda i: (0, 0)),
                    pl.BlockSpec((1, N), lambda i: (0, 0)),
                    pl.BlockSpec((tm, N), lambda i: (i, 0)),   # residual
                    pl.BlockSpec((1, N), lambda i: (0, 0)),    # gamma
                    pl.BlockSpec((1, N), lambda i: (0, 0)),    # beta
                ],
                out_specs=pl.BlockSpec((tm, N), lambda i: (i, 0))),
            compiler_params=pltpu.CompilerParams(
                dimension_semantics=("parallel",),
                vmem_limit_bytes=vmem),
        )(*args)
    return pl.pallas_call(
        functools.partial(_matmul_res_ln_acc_kernel, eps=eps),
        out_shape=jax.ShapeDtypeStruct((M, N), out_dtype),
        grid_spec=pltpu.PrefetchScalarGridSpec(
            num_scalar_prefetch=0, grid=(M // tm, K // tk),
            in_specs=[
                pl.BlockSpec((tm, tk), lambda i, k: (i, k)),
                pl.BlockSpec((tk, N), lambda i, k: (k, 0)),
                pl.BlockSpec((1, N), lambda i, k: (0, 0)),
                pl.BlockSpec((tm, N), lambda i, k: (i, 0)),    # residual
                pl.BlockSpec((1, N), lambda i, k: (0, 0)),     # gamma
                pl.BlockSpec((1, N), lambda i, k: (0, 0)),     # beta
            ],
            out_specs=pl.BlockSpec((tm, N), lambda i, k: (i, 0)),
            scratch_shapes=[pltpu.VMEM((tm, N), jnp.float32)]),
        compiler_params=pltpu.CompilerParams(
            dimension_semantics=("parallel", "arbitrary"),
            vmem_limit_bytes=vmem),
    )(*args)


def layernorm(x, gamma, beta, *, eps, out_dtype=jnp.bfloat16):
    M, H = x.shape
    tm = _pick_tile(M, _TM_LN, 16)
    return pl.pallas_call(
        functools.partial(_ln_kernel, eps=eps),
        out_shape=jax.ShapeDtypeStruct((M, H), out_dtype),
        grid_spec=pltpu.PrefetchScalarGridSpec(
            num_scalar_prefetch=0, grid=(M // tm,),
            in_specs=[pl.BlockSpec((tm, H), lambda i: (i, 0)),
                      pl.BlockSpec((1, H), lambda i: (0, 0)),
                      pl.BlockSpec((1, H), lambda i: (0, 0))],
            out_specs=pl.BlockSpec((tm, H), lambda i: (i, 0))),
        compiler_params=pltpu.CompilerParams(
            dimension_semantics=("parallel",),
            vmem_limit_bytes=_vmem_limit_bytes()),
    )(x, gamma.reshape(1, H), beta.reshape(1, H))


def mha_attention(qkv, addmask, n_heads):
    # qkv: (B, S, 3H) bf16 fused [Q|K|V]; addmask: (B, 1, S) f32 additive mask.
    B, S, H3 = qkv.shape
    H = H3 // 3
    head_dim = H // n_heads
    scale = 1.0 / math.sqrt(head_dim)
    tq = _pick_tile(S, _TQ, 8)
    return pl.pallas_call(
        functools.partial(_attn_kernel, n_heads=n_heads, head_dim=head_dim,
                          scale=scale),
        out_shape=jax.ShapeDtypeStruct((B, S, H), jnp.bfloat16),
        grid_spec=pltpu.PrefetchScalarGridSpec(
            num_scalar_prefetch=0, grid=(B, S // tq),
            in_specs=[
                # Query rows of this tile (full 3H minor dim keeps the block
                # legal for any H; Q columns are sliced inside the kernel).
                pl.BlockSpec((None, tq, H3), lambda b, qi: (b, qi, 0)),
                # Full-sequence K/V slab; index constant in qi -> one DMA/batch.
                pl.BlockSpec((None, S, H3), lambda b, qi: (b, 0, 0)),
                pl.BlockSpec((None, 1, S), lambda b, qi: (b, 0, 0)),
            ],
            out_specs=pl.BlockSpec((None, tq, H), lambda b, qi: (b, qi, 0))),
        compiler_params=pltpu.CompilerParams(
            dimension_semantics=("parallel", "parallel"),
            vmem_limit_bytes=_vmem_limit_bytes()),
    )(qkv, qkv, addmask)


# ----------------------------- model definition ----------------------------- #

def init_params(key, cfg):
    H, I, L = cfg["hidden"], cfg["inter"], cfg["layers"]

    def nrm(k, shape, dtype=jnp.bfloat16):
        return (0.02 * jax.random.normal(k, shape, jnp.float32)).astype(dtype)

    keys = iter(jax.random.split(key, 8 + 16 * L))
    p = {
        "word_emb": nrm(next(keys), (cfg["vocab"], H), jnp.float32),
        "pos_emb": nrm(next(keys), (cfg["max_pos"], H), jnp.float32),
        "type_emb": nrm(next(keys), (1, H), jnp.float32),
        "emb_ln_g": jnp.ones((H,), jnp.float32),
        "emb_ln_b": jnp.zeros((H,), jnp.float32),
        "layers": [],
    }
    for _ in range(L):
        wq = nrm(next(keys), (H, H))
        wk = nrm(next(keys), (H, H))
        wv = nrm(next(keys), (H, H))
        lp = {
            # fused Q|K|V projection: one (H, 3H) matmul instead of three launches
            "w_qkv": jnp.concatenate([wq, wk, wv], axis=1),
            "b_qkv": jnp.zeros((3 * H,), jnp.float32),
            "wo": nrm(next(keys), (H, H)), "bo": jnp.zeros((H,), jnp.float32),
            "ln1_g": jnp.ones((H,), jnp.float32), "ln1_b": jnp.zeros((H,), jnp.float32),
            "wi": nrm(next(keys), (H, I)), "bi": jnp.zeros((I,), jnp.float32),
            "wf": nrm(next(keys), (I, H)), "bf": jnp.zeros((H,), jnp.float32),
            "ln2_g": jnp.ones((H,), jnp.float32), "ln2_b": jnp.zeros((H,), jnp.float32),
        }
        p["layers"].append(lp)
    # classifier head nn.Linear(hidden, n_classes); output dim zero-padded to 128
    # lanes so the head matmul stores are unmasked -- real logits are columns [:C].
    n_pad = max(128, cfg["n_classes"])
    w_out = nrm(next(keys), (H, cfg["n_classes"]))
    p["w_out"] = jnp.zeros((H, n_pad), jnp.bfloat16).at[:, :cfg["n_classes"]].set(w_out)
    p["b_out"] = jnp.zeros((n_pad,), jnp.float32)
    return p


def forward(params, input_ids, attention_mask, cfg):
    H, nH, eps = cfg["hidden"], cfg["heads"], cfg["eps"]
    B, S = input_ids.shape
    mask_f = attention_mask.astype(jnp.float32)

    # RoBERTa position ids (padding_idx = 1).
    pad_idx = 1
    not_pad = (input_ids != pad_idx).astype(jnp.int32)
    position_ids = jnp.cumsum(not_pad, axis=1) * not_pad + pad_idx

    # Embedding gathers are glue in plain JAX; the sum is cast to bf16 before the
    # (HBM-bound) LN kernel, which upcasts to f32 internally.
    emb = (params["word_emb"][input_ids]
           + params["pos_emb"][position_ids]
           + params["type_emb"][jnp.zeros_like(input_ids)])
    x = layernorm(emb.astype(jnp.bfloat16).reshape(B * S, H),
                  params["emb_ln_g"], params["emb_ln_b"], eps=eps)

    # HF-style additive attention mask, built once.
    # NOTE: fully-padded query rows get a uniform softmax over masked scores; their
    # outputs are meaningless but harmless since only the CLS token is pooled.
    addmask = ((1.0 - mask_f) * -10000.0).reshape(B, 1, S)

    for lp in params["layers"]:
        qkv = linear(x, lp["w_qkv"], lp["b_qkv"])                    # (B*S, 3H)
        ctx = mha_attention(qkv.reshape(B, S, 3 * H), addmask, nH)   # (B, S, H)
        x_attn = linear_residual_ln(ctx.reshape(B * S, H), lp["wo"], lp["bo"],
                                    x, lp["ln1_g"], lp["ln1_b"], eps=eps)
        inter = linear(x_attn, lp["wi"], lp["bi"], activation="gelu")
        x = linear_residual_ln(inter, lp["wf"], lp["bf"],
                               x_attn, lp["ln2_g"], lp["ln2_b"], eps=eps)

    hidden_state = x.reshape(B, S, H)          # roberta_output[0]
    pooled_output = hidden_state[:, 0]         # CLS token pooling
    # nn.Dropout is identity at inference time.
    logits_padded = linear(pooled_output, params["w_out"], params["b_out"],
                           out_dtype=jnp.float32)
    return logits_padded[:, :cfg["n_classes"]]


# ----------------------------------- main ----------------------------------- #

if __name__ == "__main__":
    cfg = dict(hidden=32, heads=4, layers=2, inter=64,
               vocab=100, max_pos=40, n_classes=3, eps=1e-5)
    B, S = 2, 8

    key = jax.random.PRNGKey(0)
    k_params, k_ids = jax.random.split(key)
    params = init_params(k_params, cfg)

    input_ids = jax.random.randint(k_ids, (B, S), 2, cfg["vocab"], dtype=jnp.int32)
    attention_mask = jnp.ones((B, S), dtype=jnp.int32).at[:, -2:].set(0)
    input_ids = jnp.where(attention_mask == 1, input_ids, 1)  # pad token id = 1

    logits = forward(params, input_ids, attention_mask, cfg)
    jax.block_until_ready(logits)
    assert logits.shape == (B, cfg["n_classes"])
    print("KERNEL_OK")
</pallas_src>

<mosaic_0001>
module attributes {stable_mosaic.version = 11 : i64} {
  func.func @_ln_kernel(%arg0: i32, %arg1: memref<16x32xbf16, #tpu.memory_space<vmem>>, %arg2: memref<1x32xf32, #tpu.memory_space<vmem>>, %arg3: memref<1x32xf32, #tpu.memory_space<vmem>>, %arg4: memref<16x32xbf16, #tpu.memory_space<vmem>>) attributes {dimension_semantics = [#tpu.dimension_semantics<parallel>], iteration_bounds = array<i64: 1>, scalar_prefetch = 0 : i64, scratch_operands = 0 : i64, tpu.core_type = #tpu.core_type<tc>, window_params = [{transform_indices = @transform_0, window_bounds = array<i64: 16, 32>}, {pipeline_mode = #tpu.pipeline_mode<synchronous>, transform_indices = @transform_1, window_bounds = array<i64: 1, 32>}, {pipeline_mode = #tpu.pipeline_mode<synchronous>, transform_indices = @transform_2, window_bounds = array<i64: 1, 32>}, {transform_indices = @transform_3, window_bounds = array<i64: 16, 32>}]} {
    %c0 = arith.constant 0 : index
    %c0_0 = arith.constant 0 : index
    %0 = vector.load %arg1[%c0, %c0_0] : memref<16x32xbf16, #tpu.memory_space<vmem>>, vector<16x32xbf16>
    %1 = arith.extf %0 : vector<16x32xbf16> to vector<16x32xf32>
    %cst = arith.constant dense<0.000000e+00> : vector<16xf32>
    %2 = vector.multi_reduction <add>, %1, %cst [1] : vector<16x32xf32> to vector<16xf32>
    %3 = vector.shape_cast %2 : vector<16xf32> to vector<16x1xf32>
    %cst_1 = arith.constant 3.200000e+01 : f32
    %4 = vector.broadcast %cst_1 : f32 to vector<16x1xf32>
    %5 = arith.divf %3, %4 : vector<16x1xf32>
    %6 = vector.broadcast %5 : vector<16x1xf32> to vector<16x32xf32>
    %7 = arith.subf %1, %6 : vector<16x32xf32>
    %8 = arith.mulf %7, %7 : vector<16x32xf32>
    %cst_2 = arith.constant dense<0.000000e+00> : vector<16xf32>
    %9 = vector.multi_reduction <add>, %8, %cst_2 [1] : vector<16x32xf32> to vector<16xf32>
    %10 = vector.shape_cast %9 : vector<16xf32> to vector<16x1xf32>
    %cst_3 = arith.constant 3.200000e+01 : f32
    %11 = vector.broadcast %cst_3 : f32 to vector<16x1xf32>
    %12 = arith.divf %10, %11 : vector<16x1xf32>
    %13 = vector.broadcast %5 : vector<16x1xf32> to vector<16x32xf32>
    %14 = arith.subf %1, %13 : vector<16x32xf32>
    %cst_4 = arith.constant 9.99999974E-6 : f32
    %15 = vector.broadcast %cst_4 : f32 to vector<16x1xf32>
    %16 = arith.addf %12, %15 : vector<16x1xf32>
    %17 = math.rsqrt %16 : vector<16x1xf32>
    %18 = vector.broadcast %17 : vector<16x1xf32> to vector<16x32xf32>
    %19 = arith.mulf %14, %18 : vector<16x32xf32>
    %c0_5 = arith.constant 0 : index
    %c0_6 = arith.constant 0 : index
    %20 = vector.load %arg2[%c0_5, %c0_6] : memref<1x32xf32, #tpu.memory_space<vmem>>, vector<1x32xf32>
    %21 = vector.broadcast %20 : vector<1x32xf32> to vector<16x32xf32>
    %22 = arith.mulf %19, %21 : vector<16x32xf32>
    %c0_7 = arith.constant 0 : index
    %c0_8 = arith.constant 0 : index
    %23 = vector.load %arg3[%c0_7, %c0_8] : memref<1x32xf32, #tpu.memory_space<vmem>>, vector<1x32xf32>
    %24 = vector.broadcast %23 : vector<1x32xf32> to vector<16x32xf32>
    %25 = arith.addf %22, %24 : vector<16x32xf32>
    %26 = arith.truncf %25 : vector<16x32xf32> to vector<16x32xbf16>
    %c0_9 = arith.constant 0 : index
    %c0_10 = arith.constant 0 : index
    %27 = vector.load %arg4[%c0_9, %c0_10] : memref<16x32xbf16, #tpu.memory_space<vmem>>, vector<16x32xbf16>
    tpu.vector_store %arg4[%c0_9, %c0_10], %26 {strides = array<i32>} : memref<16x32xbf16, #tpu.memory_space<vmem>>, vector<16x32xbf16>,
    return
  }
  func.func @transform_0(%arg0: i32) -> (i32, i32) {
    %c0_i32 = arith.constant 0 : i32
    %c0_i32_0 = arith.constant 0 : i32
    return %arg0, %c0_i32 : i32, i32
  }
  func.func @transform_1(%arg0: i32) -> (i32, i32) {
    %c0_i32 = arith.constant 0 : i32
    %c0_i32_0 = arith.constant 0 : i32
    %c0_i32_1 = arith.constant 0 : i32
    return %c0_i32, %c0_i32_0 : i32, i32
  }
  func.func @transform_2(%arg0: i32) -> (i32, i32) {
    %c0_i32 = arith.constant 0 : i32
    %c0_i32_0 = arith.constant 0 : i32
    %c0_i32_1 = arith.constant 0 : i32
    return %c0_i32, %c0_i32_0 : i32, i32
  }
  func.func @transform_3(%arg0: i32) -> (i32, i32) {
    %c0_i32 = arith.constant 0 : i32
    %c0_i32_0 = arith.constant 0 : i32
    return %arg0, %c0_i32 : i32, i32
  }
}

</mosaic_0001>

<llo_original>
// kernel: tpu_custom_call.1
$region0: #{tpu_custom_call.1}
  #allocation0 [shape = 'u32[]', space=smem, size = 0x4, offset = 0x4, fixed_abs, tag = 'smem constant byte address 0x4 - core index']
  #allocation1 [shape = 'u32[144,128]{1,0:T(1,128)}', space=vmem, size = 0x12000, scoped, tag = 'internal scratch']
  %s0 = inlined_call_operand.hbm [shape: bf16[16,32], index: 0, kind: input, shape index: {}]
  %s1 = inlined_call_operand.vmem [shape: f32[1,32], index: 1, kind: input, shape index: {}]
  %s2 = inlined_call_operand.vmem [shape: f32[1,32], index: 2, kind: input, shape index: {}]
  %s3 = inlined_call_operand.hbm [shape: bf16[16,32], index: 3, kind: output, shape index: {}]
  %s4 = sld [smem:[#allocation0]]
  $region26: #{tpu_custom_call.1} parent=0
    _
  %s6 = ssub.s32 1, %s4
  %s7 = scalar_select 0, %s6, %s4
  $region1: #{tpu_custom_call.1} parent=0
    #allocation2 [shape = 'u8[4096]{0}', space=vmem, size = 0x1000, scoped, tag = 'input window, operand 0, single buffered']
    #allocation3 [shape = 's32[1]{0}', space=sflag, size = 0x4, scoped, tag = 'scoped memory for tpu_custom_call.1']
    #allocation4 [shape = 's32[1]{0}', space=sflag, size = 0x4, scoped, tag = 'scoped memory for tpu_custom_call.1']
    #allocation5 [shape = 'u8[4096]{0}', space=vmem, size = 0x1000, scoped, tag = 'output window, operand 0, single buffered']
    %8 = vsyncpa [#allocation3], 0
    %9 = vsyncpa [#allocation4], 0
    // Predicated region
    $region2: #{tpu_custom_call.1} parent=1 // pred_check
      _
    $region3: #{tpu_custom_call.1} parent=1 // pred_check_branch
      %11 = sbr.rel (0) target = $region5
    $region4: #{tpu_custom_call.1} parent=1 // pred_region
      %s13 = ssub.s32 128, 128
      %14 = vsyncadd [#allocation3], %s13
      %s15 = sshll.u32 [#allocation2], 4
      %s16 = int_to_ptr.vmem [resolvable:$true] %s15
      %21 = dma.hbm_to_vmem [thread:$0]  %s0, 128, %s16, [#allocation3], 64, 64, 4
    $region5: #{tpu_custom_call.1} parent=1 // pred_fallthru
      _
    // Predicated region
    $region6: #{tpu_custom_call.1} parent=1 // pred_check
      _
    $region7: #{tpu_custom_call.1} parent=1 // pred_check_branch
      %23 = sbr.rel (0) target = $region9
    $region8: #{tpu_custom_call.1} parent=1 // pred_region
      _
    $region9: #{tpu_custom_call.1} parent=1 // pred_fallthru
      _
    // Predicated region
    $region10: #{tpu_custom_call.1} parent=1 // pred_check
      _
    $region11: #{tpu_custom_call.1} parent=1 // pred_check_branch
      %25 = sbr.rel (0) target = $region13
    $region12: #{tpu_custom_call.1} parent=1 // pred_region
      _
    $region13: #{tpu_custom_call.1} parent=1 // pred_fallthru
      _
    // Predicated region
    $region14: #{tpu_custom_call.1} parent=1 // pred_check
      _
    $region15: #{tpu_custom_call.1} parent=1 // pred_check_branch
      %27 = sbr.rel (0) target = $region17
    $region16: #{tpu_custom_call.1} parent=1 // pred_region
      %28 = dma.done [#allocation3], 128
    $region17: #{tpu_custom_call.1} parent=1 // pred_fallthru
      _
    %v29 = vld [vmem:[#allocation2] sm:$0xf]
    %v30 = vld [vmem:[#allocation2 + $0x4] sm:$0xf]
    %v31 = vunpack.c.l.bf16 %v29
    %v32 = vunpack.c.l.bf16 %v30
    %vm33 = vcmask 261120
    %v34 = vsel %vm33, %v31, 0.0
    %35 = vadd.xlane.f32.xlu0 %v34
    %v36 = vpop.xlane.xlu0 %35
    %v37 = vsel %vm33, %v32, 0.0
    %38 = vadd.xlane.f32.xlu0 %v37
    %v39 = vpop.xlane.xlu0 %38
    %v40 = vrcp.pop 32.0
    %v41 = vmul.f32 %v36, %v40
    %v42 = vmul.f32 %v39, %v40
    %v43 = vsub.f32 %v31, %v41
    %v44 = vsub.f32 %v32, %v42
    %v45 = vmul.f32 %v43, %v43
    %v46 = vmul.f32 %v44, %v44
    %v47 = vsel %vm33, %v45, 0.0
    %48 = vadd.xlane.f32.xlu0 %v47
    %v49 = vpop.xlane.xlu0 %48
    %v50 = vsel %vm33, %v46, 0.0
    %51 = vadd.xlane.f32.xlu0 %v50
    %v52 = vpop.xlane.xlu0 %51
    %v53 = vmul.f32 %v49, %v40
    %v54 = vmul.f32 %v52, %v40
    %v55 = vadd.f32 %v53, 1e-05
    %v56 = vadd.f32 %v54, 1e-05
    %v57 = vrsqrt.pop %v55
    %v58 = vrsqrt.pop %v56
    %v59 = vmul.f32 %v43, %v57
    %v60 = vmul.f32 %v44, %v58
    %v61 = vld [vmem:[%s1] sm:$0x1]
    %v63 = vlaneseq
    %v64 = vshrl.u32 %v63, 7
    %v65 = vsub.s32 0, %v64
    %v66 = vrot.slane %v61, %v65
    %v68 = vmul.f32 %v59, %v66
    %v69 = vmul.f32 %v60, %v66
    %v70 = vld [vmem:[%s2] sm:$0x1]
    %v72 = vlaneseq
    %v73 = vshrl.u32 %v72, 7
    %v74 = vsub.s32 0, %v73
    %v75 = vrot.slane %v70, %v74
    %v77 = vadd.f32 %v68, %v75
    %v78 = vadd.f32 %v69, %v75
    %v79 = vpack.c.bf16 %v78, %v77
    %v81 = vunpack.c.l.b16 %v79
    %v82 = vunpack.c.h.b16 %v79
    %v83 = vpack.c.b16 %v81, %v81
    %v84 = vpack.c.b16 %v82, %v82
    %vm87 = vcmask 257024
    %88 = vst.msk [vmem:[#allocation5] sm:$0xf] %vm87, %v83
    %89 = vst.msk [vmem:[#allocation5 + $0x4] sm:$0xf] %vm87, %v84
    // Predicated region
    $region18: #{tpu_custom_call.1} parent=1 // pred_check
      _
    $region19: #{tpu_custom_call.1} parent=1 // pred_check_branch
      %91 = sbr.rel (0) target = $region21
    $region20: #{tpu_custom_call.1} parent=1 // pred_region
      %s93 = ssub.s32 128, 128
      %94 = vsyncadd [#allocation4], %s93
      %s95 = sshll.u32 [#allocation5], 4
      %s96 = int_to_ptr.vmem [resolvable:$true] %s95
      %101 = dma.vmem_to_hbm [thread:$0]  %s96, 128, %s3, [#allocation4], 64, 64, 4
    $region21: #{tpu_custom_call.1} parent=1 // pred_fallthru
      _
    // Predicated region
    $region22: #{tpu_custom_call.1} parent=1 // pred_check
      _
    $region23: #{tpu_custom_call.1} parent=1 // pred_check_branch
      %103 = sbr.rel (0) target = $region25
    $region24: #{tpu_custom_call.1} parent=1 // pred_region
      %104 = dma.done [#allocation4], 128
    $region25: #{tpu_custom_call.1} parent=1 // pred_fallthru
      _
    %105 = vsyncpa [#allocation3], 1
    %106 = vsyncpa [#allocation4], 1

</llo_original>
